<compile_context>
chip_gen: v7x
topology: tpu7x:2x2x1
jax: 0.10.0
libtpu: 0.0.40
codegen_flags: <defaults>
</compile_context>

<pallas_src>
import functools

import jax
import jax.numpy as jnp
from jax import lax
from jax.experimental import pallas as pl
from jax.experimental.pallas import tpu as pltpu


# --------------------------------------------------------------------------------------
# Pallas kernel: fused (3x3x3 conv, pad 1) + (2x2x2 mean pool) for one batch / output row
# --------------------------------------------------------------------------------------
def _fused_conv_pool_kernel(x0_ref, x1_ref, w_ref, o_ref, *, m_out, col_deltas):
    # x0_ref/x1_ref: (1, 1, C8, M_in)   space-to-depth rows h2 and h2+1 (bf16)
    # w_ref:         (2, 4, Cout, C8)   fused 4x4x4 stride-2 conv taps (bf16, VMEM resident)
    # o_ref:         (1, 1, Cout, M_out)
    acc = None
    for sa, xref in ((0, x0_ref), (1, x1_ref)):
        for t, d in enumerate(col_deltas):
            part = jnp.dot(w_ref[sa, t],                      # (Cout, C8)
                           xref[0, 0, :, pl.ds(d, m_out)],    # ref-sliced tap, no window copy
                           preferred_element_type=jnp.float32)
            acc = part if acc is None else acc + part
    # TODO(synk): on v7x a VMEM scratch accumulator (`acc_ref[...] += dot`) would use the MRB;
    # TODO(synk): for large Cout on v6e/v7x, stack the 4 column taps along M to fill MXU rows.
    o_ref[0, 0] = acc.astype(o_ref.dtype)


# --------------------------------------------------------------------------------------
# Host-side helpers (weight fusion + tiling arithmetic; all tiny / trace-time)
# --------------------------------------------------------------------------------------
def _ceil_to(v, m):
    return ((v + m - 1) // m) * m


def _box2(w, axis):
    # out[s] = w[s] + w[s-1] (out-of-range terms are zero): size 3 -> 4 along `axis`
    zero = jnp.zeros_like(lax.slice_in_dim(w, 0, 1, axis=axis))
    return jnp.concatenate([w, zero], axis=axis) + jnp.concatenate([zero, w], axis=axis)


def downsample_simple_forward(x, w, *, compute_dtype=jnp.bfloat16):
    """x: (B, C, H, W, D) float32;  w: (2C, C, 3, 3, 3).  Returns (B, 2C, H/2, W/2, D/2)."""
    B, Cin, H, W, D = x.shape
    Cout = w.shape[0]
    assert H % 2 == 0 and W % 2 == 0 and D % 2 == 0, "even spatial dims required"
    # TODO(synk): odd spatial sizes (floor(H/2) trilinear output) need a non-space-to-depth path.
    H2, W2, D2 = H // 2, W // 2, D // 2
    Hq, Wq, Dq = H2 + 1, W2 + 1, D2 + 1
    C8 = 8 * Cin
    M = Wq * Dq                                  # flattened (W, D) plane of the s2d volume

    # ---- fused weights: avgpool2(conv3(W, x)) == stride-2 conv with W4 = (W * box2^3) / 8
    w4 = _box2(_box2(_box2(w, 2), 3), 4) * 0.125             # (Cout, Cin, 4, 4, 4)
    wt = w4.reshape(Cout, Cin, 2, 2, 2, 2, 2, 2)             # (o, ci, sa, a, tb, b, uc, c)
    wt = wt.transpose(2, 4, 6, 0, 1, 3, 5, 7)                # (sa, tb, uc, o, ci, a, b, c)
    wt = wt.reshape(2, 4, Cout, C8).astype(compute_dtype)    # [sa][tb*2+uc](Cout, 8*Cin)

    # ---- glue: zero-pad + space-to-depth + flatten (one XLA data-movement pass over x)
    xpad = jnp.pad(x, ((0, 0), (0, 0), (1, 1), (1, 1), (1, 1)))
    xs = xpad.reshape(B, Cin, Hq, 2, Wq, 2, Dq, 2)
    xs = xs.transpose(0, 2, 1, 3, 5, 7, 4, 6).reshape(B, Hq, C8, M)

    # ---- lane-dense tiling: per grid step we emit one output row of m_out columns and read
    #      an m_in-wide input row (m_out + max column tap delta, rounded to 128 lanes)
    m_out = _ceil_to(W2 * Dq, 128)
    m_in = _ceil_to(m_out + Dq + 1, 128)
    xs = jnp.pad(xs, ((0, 0), (0, 0), (0, 0), (0, m_in - M))).astype(compute_dtype)
    col_deltas = (0, 1, Dq, Dq + 1)                          # (tb, uc) -> tb*Dq + uc

    # ---- VMEM budget: blocks x default double-buffering, with a host-side fit check (v7x 64MiB)
    itm_c = jnp.dtype(compute_dtype).itemsize
    itm_o = jnp.dtype(x.dtype).itemsize
    blk_bytes = 2 * C8 * m_in * itm_c + wt.size * itm_c + Cout * m_out * itm_o
    vmem_need = 2 * blk_bytes
    assert vmem_need + (8 << 20) <= (64 << 20), (
        f"working set {vmem_need >> 20} MiB exceeds v7x VMEM; tile the (W,D) plane")
    vmem_limit = int(min(64 << 20, max(32 << 20, vmem_need + (8 << 20))))

    kern = functools.partial(_fused_conv_pool_kernel, m_out=m_out, col_deltas=col_deltas)
    zf = pl.pallas_call(
        kern,
        out_shape=jax.ShapeDtypeStruct((B, H2, Cout, m_out), x.dtype),
        grid=(B, H2),
        in_specs=[
            pl.BlockSpec((1, 1, C8, m_in), lambda b, h: (b, h, 0, 0)),      # s2d row h2   (sa=0)
            pl.BlockSpec((1, 1, C8, m_in), lambda b, h: (b, h + 1, 0, 0)),  # s2d row h2+1 (sa=1)
            pl.BlockSpec((2, 4, Cout, C8), lambda b, h: (0, 0, 0, 0)),      # weights resident
        ],
        out_specs=pl.BlockSpec((1, 1, Cout, m_out), lambda b, h: (b, h, 0, 0)),
        compiler_params=pltpu.CompilerParams(
            dimension_semantics=("parallel", "parallel"),
            vmem_limit_bytes=vmem_limit),
    )(xs, xs, wt)

    # ---- glue: drop padded-stride garbage columns (output is 1/8 resolution -> cheap)
    z = zf[:, :, :, :W2 * Dq].reshape(B, H2, Cout, W2, Dq)[..., :D2]
    return z.transpose(0, 2, 1, 3, 4)                         # (B, Cout, H2, W2, D2)


# --------------------------------------------------------------------------------------
# Pure-JAX reference (PyTorch semantics): conv3d(pad=1) + trilinear 0.5x (== 2x2x2 mean)
# --------------------------------------------------------------------------------------
def reference_forward(x, w):
    y = lax.conv_general_dilated(
        x, w, window_strides=(1, 1, 1), padding=((1, 1), (1, 1), (1, 1)),
        dimension_numbers=("NCDHW", "OIDHW", "NCDHW"),
        precision=lax.Precision.HIGHEST)
    B, Cout, H, W, D = y.shape
    y = y.reshape(B, Cout, H // 2, 2, W // 2, 2, D // 2, 2)
    return y.mean(axis=(3, 5, 7))


# --------------------------------------------------------------------------------------
if __name__ == "__main__":
    n_feat = 4
    B, H, W, D = 2, 16, 16, 16

    key = jax.random.PRNGKey(0)
    kx, kw = jax.random.split(key)
    x = jax.random.normal(kx, (B, n_feat, H, W, D), jnp.float32)
    w = 0.2 * jax.random.normal(kw, (2 * n_feat, n_feat, 3, 3, 3), jnp.float32)

    out = jax.jit(downsample_simple_forward)(x, w)
    out = jax.block_until_ready(out)

    ref = reference_forward(x, w)
    assert out.shape == (B, 2 * n_feat, H // 2, W // 2, D // 2)
    assert bool(jnp.all(jnp.isfinite(out)))
    # bf16 MXU operands (fp32 accumulation) vs. f32 reference -> widened tolerance.
    assert jnp.allclose(out, ref, atol=2e-2, rtol=2e-2), float(jnp.max(jnp.abs(out - ref)))

    print("KERNEL_OK")
</pallas_src>

<mosaic_0001>
module attributes {stable_mosaic.version = 11 : i64} {
  func.func @_fused_conv_pool_kernel(%arg0: i32, %arg1: i32, %arg2: memref<1x1x32x256xbf16, #tpu.memory_space<vmem>>, %arg3: memref<1x1x32x256xbf16, #tpu.memory_space<vmem>>, %arg4: memref<2x4x8x32xbf16, #tpu.memory_space<vmem>>, %arg5: memref<1x1x8x128xf32, #tpu.memory_space<vmem>>) attributes {dimension_semantics = [#tpu.dimension_semantics<parallel>, #tpu.dimension_semantics<parallel>], iteration_bounds = array<i64: 2, 8>, scalar_prefetch = 0 : i64, scratch_operands = 0 : i64, tpu.core_type = #tpu.core_type<tc>, window_params = [{transform_indices = @transform_0, window_bounds = array<i64: 1, 1, 32, 256>}, {transform_indices = @transform_1, window_bounds = array<i64: 1, 1, 32, 256>}, {pipeline_mode = #tpu.pipeline_mode<synchronous>, transform_indices = @transform_2, window_bounds = array<i64: 2, 4, 8, 32>}, {transform_indices = @transform_3, window_bounds = array<i64: 1, 1, 8, 128>}]} {
    %c0 = arith.constant 0 : index
    %c0_0 = arith.constant 0 : index
    %c0_1 = arith.constant 0 : index
    %c0_2 = arith.constant 0 : index
    %0 = vector.load %arg4[%c0, %c0_0, %c0_1, %c0_2] : memref<2x4x8x32xbf16, #tpu.memory_space<vmem>>, vector<1x1x8x32xbf16>
    %1 = vector.shape_cast %0 : vector<1x1x8x32xbf16> to vector<8x32xbf16>
    %c0_3 = arith.constant 0 : index
    %c0_4 = arith.constant 0 : index
    %c0_5 = arith.constant 0 : index
    %c0_6 = arith.constant 0 : index
    %2 = vector.load %arg2[%c0_3, %c0_4, %c0_5, %c0_6] : memref<1x1x32x256xbf16, #tpu.memory_space<vmem>>, vector<1x1x32x128xbf16>
    %3 = vector.shape_cast %2 : vector<1x1x32x128xbf16> to vector<32x128xbf16>
    %cst = arith.constant dense<0.000000e+00> : vector<8x128xf32>
    %4 = tpu.matmul %1, %3, %cst {dimension_numbers = #tpu.dot_dimension_numbers<[1], [0], [0], [1], [0, 0, 1, 1], [], []>} : vector<8x32xbf16>, vector<32x128xbf16>, vector<8x128xf32> -> vector<8x128xf32>
    %c0_7 = arith.constant 0 : index
    %c1 = arith.constant 1 : index
    %c0_8 = arith.constant 0 : index
    %c0_9 = arith.constant 0 : index
    %5 = vector.load %arg4[%c0_7, %c1, %c0_8, %c0_9] : memref<2x4x8x32xbf16, #tpu.memory_space<vmem>>, vector<1x1x8x32xbf16>
    %6 = vector.shape_cast %5 : vector<1x1x8x32xbf16> to vector<8x32xbf16>
    %c0_10 = arith.constant 0 : index
    %c0_11 = arith.constant 0 : index
    %c0_12 = arith.constant 0 : index
    %c1_13 = arith.constant 1 : index
    %7 = vector.load %arg2[%c0_10, %c0_11, %c0_12, %c1_13] : memref<1x1x32x256xbf16, #tpu.memory_space<vmem>>, vector<1x1x32x128xbf16>
    %8 = vector.shape_cast %7 : vector<1x1x32x128xbf16> to vector<32x128xbf16>
    %cst_14 = arith.constant dense<0.000000e+00> : vector<8x128xf32>
    %9 = tpu.matmul %6, %8, %cst_14 {dimension_numbers = #tpu.dot_dimension_numbers<[1], [0], [0], [1], [0, 0, 1, 1], [], []>} : vector<8x32xbf16>, vector<32x128xbf16>, vector<8x128xf32> -> vector<8x128xf32>
    %10 = arith.addf %4, %9 : vector<8x128xf32>
    %c0_15 = arith.constant 0 : index
    %c2 = arith.constant 2 : index
    %c0_16 = arith.constant 0 : index
    %c0_17 = arith.constant 0 : index
    %11 = vector.load %arg4[%c0_15, %c2, %c0_16, %c0_17] : memref<2x4x8x32xbf16, #tpu.memory_space<vmem>>, vector<1x1x8x32xbf16>
    %12 = vector.shape_cast %11 : vector<1x1x8x32xbf16> to vector<8x32xbf16>
    %c0_18 = arith.constant 0 : index
    %c0_19 = arith.constant 0 : index
    %c0_20 = arith.constant 0 : index
    %c9 = arith.constant 9 : index
    %13 = vector.load %arg2[%c0_18, %c0_19, %c0_20, %c9] : memref<1x1x32x256xbf16, #tpu.memory_space<vmem>>, vector<1x1x32x128xbf16>
    %14 = vector.shape_cast %13 : vector<1x1x32x128xbf16> to vector<32x128xbf16>
    %cst_21 = arith.constant dense<0.000000e+00> : vector<8x128xf32>
    %15 = tpu.matmul %12, %14, %cst_21 {dimension_numbers = #tpu.dot_dimension_numbers<[1], [0], [0], [1], [0, 0, 1, 1], [], []>} : vector<8x32xbf16>, vector<32x128xbf16>, vector<8x128xf32> -> vector<8x128xf32>
    %16 = arith.addf %10, %15 : vector<8x128xf32>
    %c0_22 = arith.constant 0 : index
    %c3 = arith.constant 3 : index
    %c0_23 = arith.constant 0 : index
    %c0_24 = arith.constant 0 : index
    %17 = vector.load %arg4[%c0_22, %c3, %c0_23, %c0_24] : memref<2x4x8x32xbf16, #tpu.memory_space<vmem>>, vector<1x1x8x32xbf16>
    %18 = vector.shape_cast %17 : vector<1x1x8x32xbf16> to vector<8x32xbf16>
    %c0_25 = arith.constant 0 : index
    %c0_26 = arith.constant 0 : index
    %c0_27 = arith.constant 0 : index
    %c10 = arith.constant 10 : index
    %19 = vector.load %arg2[%c0_25, %c0_26, %c0_27, %c10] : memref<1x1x32x256xbf16, #tpu.memory_space<vmem>>, vector<1x1x32x128xbf16>
    %20 = vector.shape_cast %19 : vector<1x1x32x128xbf16> to vector<32x128xbf16>
    %cst_28 = arith.constant dense<0.000000e+00> : vector<8x128xf32>
    %21 = tpu.matmul %18, %20, %cst_28 {dimension_numbers = #tpu.dot_dimension_numbers<[1], [0], [0], [1], [0, 0, 1, 1], [], []>} : vector<8x32xbf16>, vector<32x128xbf16>, vector<8x128xf32> -> vector<8x128xf32>
    %22 = arith.addf %16, %21 : vector<8x128xf32>
    %c1_29 = arith.constant 1 : index
    %c0_30 = arith.constant 0 : index
    %c0_31 = arith.constant 0 : index
    %c0_32 = arith.constant 0 : index
    %23 = vector.load %arg4[%c1_29, %c0_30, %c0_31, %c0_32] : memref<2x4x8x32xbf16, #tpu.memory_space<vmem>>, vector<1x1x8x32xbf16>
    %24 = vector.shape_cast %23 : vector<1x1x8x32xbf16> to vector<8x32xbf16>
    %c0_33 = arith.constant 0 : index
    %c0_34 = arith.constant 0 : index
    %c0_35 = arith.constant 0 : index
    %c0_36 = arith.constant 0 : index
    %25 = vector.load %arg3[%c0_33, %c0_34, %c0_35, %c0_36] : memref<1x1x32x256xbf16, #tpu.memory_space<vmem>>, vector<1x1x32x128xbf16>
    %26 = vector.shape_cast %25 : vector<1x1x32x128xbf16> to vector<32x128xbf16>
    %cst_37 = arith.constant dense<0.000000e+00> : vector<8x128xf32>
    %27 = tpu.matmul %24, %26, %cst_37 {dimension_numbers = #tpu.dot_dimension_numbers<[1], [0], [0], [1], [0, 0, 1, 1], [], []>} : vector<8x32xbf16>, vector<32x128xbf16>, vector<8x128xf32> -> vector<8x128xf32>
    %28 = arith.addf %22, %27 : vector<8x128xf32>
    %c1_38 = arith.constant 1 : index
    %c1_39 = arith.constant 1 : index
    %c0_40 = arith.constant 0 : index
    %c0_41 = arith.constant 0 : index
    %29 = vector.load %arg4[%c1_38, %c1_39, %c0_40, %c0_41] : memref<2x4x8x32xbf16, #tpu.memory_space<vmem>>, vector<1x1x8x32xbf16>
    %30 = vector.shape_cast %29 : vector<1x1x8x32xbf16> to vector<8x32xbf16>
    %c0_42 = arith.constant 0 : index
    %c0_43 = arith.constant 0 : index
    %c0_44 = arith.constant 0 : index
    %c1_45 = arith.constant 1 : index
    %31 = vector.load %arg3[%c0_42, %c0_43, %c0_44, %c1_45] : memref<1x1x32x256xbf16, #tpu.memory_space<vmem>>, vector<1x1x32x128xbf16>
    %32 = vector.shape_cast %31 : vector<1x1x32x128xbf16> to vector<32x128xbf16>
    %cst_46 = arith.constant dense<0.000000e+00> : vector<8x128xf32>
    %33 = tpu.matmul %30, %32, %cst_46 {dimension_numbers = #tpu.dot_dimension_numbers<[1], [0], [0], [1], [0, 0, 1, 1], [], []>} : vector<8x32xbf16>, vector<32x128xbf16>, vector<8x128xf32> -> vector<8x128xf32>
    %34 = arith.addf %28, %33 : vector<8x128xf32>
    %c1_47 = arith.constant 1 : index
    %c2_48 = arith.constant 2 : index
    %c0_49 = arith.constant 0 : index
    %c0_50 = arith.constant 0 : index
    %35 = vector.load %arg4[%c1_47, %c2_48, %c0_49, %c0_50] : memref<2x4x8x32xbf16, #tpu.memory_space<vmem>>, vector<1x1x8x32xbf16>
    %36 = vector.shape_cast %35 : vector<1x1x8x32xbf16> to vector<8x32xbf16>
    %c0_51 = arith.constant 0 : index
    %c0_52 = arith.constant 0 : index
    %c0_53 = arith.constant 0 : index
    %c9_54 = arith.constant 9 : index
    %37 = vector.load %arg3[%c0_51, %c0_52, %c0_53, %c9_54] : memref<1x1x32x256xbf16, #tpu.memory_space<vmem>>, vector<1x1x32x128xbf16>
    %38 = vector.shape_cast %37 : vector<1x1x32x128xbf16> to vector<32x128xbf16>
    %cst_55 = arith.constant dense<0.000000e+00> : vector<8x128xf32>
    %39 = tpu.matmul %36, %38, %cst_55 {dimension_numbers = #tpu.dot_dimension_numbers<[1], [0], [0], [1], [0, 0, 1, 1], [], []>} : vector<8x32xbf16>, vector<32x128xbf16>, vector<8x128xf32> -> vector<8x128xf32>
    %40 = arith.addf %34, %39 : vector<8x128xf32>
    %c1_56 = arith.constant 1 : index
    %c3_57 = arith.constant 3 : index
    %c0_58 = arith.constant 0 : index
    %c0_59 = arith.constant 0 : index
    %41 = vector.load %arg4[%c1_56, %c3_57, %c0_58, %c0_59] : memref<2x4x8x32xbf16, #tpu.memory_space<vmem>>, vector<1x1x8x32xbf16>
    %42 = vector.shape_cast %41 : vector<1x1x8x32xbf16> to vector<8x32xbf16>
    %c0_60 = arith.constant 0 : index
    %c0_61 = arith.constant 0 : index
    %c0_62 = arith.constant 0 : index
    %c10_63 = arith.constant 10 : index
    %43 = vector.load %arg3[%c0_60, %c0_61, %c0_62, %c10_63] : memref<1x1x32x256xbf16, #tpu.memory_space<vmem>>, vector<1x1x32x128xbf16>
    %44 = vector.shape_cast %43 : vector<1x1x32x128xbf16> to vector<32x128xbf16>
    %cst_64 = arith.constant dense<0.000000e+00> : vector<8x128xf32>
    %45 = tpu.matmul %42, %44, %cst_64 {dimension_numbers = #tpu.dot_dimension_numbers<[1], [0], [0], [1], [0, 0, 1, 1], [], []>} : vector<8x32xbf16>, vector<32x128xbf16>, vector<8x128xf32> -> vector<8x128xf32>
    %46 = arith.addf %40, %45 : vector<8x128xf32>
    %c0_65 = arith.constant 0 : index
    %c0_66 = arith.constant 0 : index
    %c0_67 = arith.constant 0 : index
    %c0_68 = arith.constant 0 : index
    %47 = vector.load %arg5[%c0_65, %c0_66, %c0_67, %c0_68] : memref<1x1x8x128xf32, #tpu.memory_space<vmem>>, vector<1x1x8x128xf32>
    %48 = vector.shape_cast %47 : vector<1x1x8x128xf32> to vector<8x128xf32>
    %49 = vector.shape_cast %46 : vector<8x128xf32> to vector<1x1x8x128xf32>
    tpu.vector_store %arg5[%c0_65, %c0_66, %c0_67, %c0_68], %49 {strides = array<i32>} : memref<1x1x8x128xf32, #tpu.memory_space<vmem>>, vector<1x1x8x128xf32>,
    return
  }
  func.func @transform_0(%arg0: i32, %arg1: i32) -> (i32, i32, i32, i32) {
    %c0_i32 = arith.constant 0 : i32
    %c0_i32_0 = arith.constant 0 : i32
    %c0_i32_1 = arith.constant 0 : i32
    return %arg0, %arg1, %c0_i32, %c0_i32_0 : i32, i32, i32, i32
  }
  func.func @transform_1(%arg0: i32, %arg1: i32) -> (i32, i32, i32, i32) {
    %c1_i32 = arith.constant 1 : i32
    %0 = arith.addi %arg1, %c1_i32 : i32
    %c0_i32 = arith.constant 0 : i32
    %c0_i32_0 = arith.constant 0 : i32
    %c0_i32_1 = arith.constant 0 : i32
    return %arg0, %0, %c0_i32, %c0_i32_0 : i32, i32, i32, i32
  }
  func.func @transform_2(%arg0: i32, %arg1: i32) -> (i32, i32, i32, i32) {
    %c0_i32 = arith.constant 0 : i32
    %c0_i32_0 = arith.constant 0 : i32
    %c0_i32_1 = arith.constant 0 : i32
    %c0_i32_2 = arith.constant 0 : i32
    %c0_i32_3 = arith.constant 0 : i32
    return %c0_i32, %c0_i32_0, %c0_i32_1, %c0_i32_2 : i32, i32, i32, i32
  }
  func.func @transform_3(%arg0: i32, %arg1: i32) -> (i32, i32, i32, i32) {
    %c0_i32 = arith.constant 0 : i32
    %c0_i32_0 = arith.constant 0 : i32
    %c0_i32_1 = arith.constant 0 : i32
    return %arg0, %arg1, %c0_i32, %c0_i32_0 : i32, i32, i32, i32
  }
}

</mosaic_0001>

<llo_original>
// kernel: downsample_simple_forward.1
$region0: #{downsample_simple_forward.1}
  #allocation0 [shape = 'u32[]', space=smem, size = 0x4, offset = 0x4, fixed_abs, tag = 'smem constant byte address 0x4 - core index']
  #allocation1 [shape = 'u32[144,128]{1,0:T(1,128)}', space=vmem, size = 0x12000, scoped, tag = 'internal scratch']
  %s0 = inlined_call_operand.vmem [shape: bf16[2,9,32,256], index: 0, kind: input, shape index: {}, may-alias: {0,1}]
  %s1 = inlined_call_operand.vmem [shape: bf16[2,9,32,256], index: 1, kind: input, shape index: {}, may-alias: {0,1}]
  %s2 = inlined_call_operand.vmem [shape: bf16[2,4,8,32], index: 2, kind: input, shape index: {}]
  %s3 = inlined_call_operand.vmem [shape: f32[2,8,8,128], index: 3, kind: output, shape index: {}]
  %s4 = sld [smem:[#allocation0]]
  $region45: #{downsample_simple_forward.1} parent=0
    _
  %s6 = ssub.s32 1, %s4
  %s7 = scalar_select 0, %s6, %s4
  loop: start=0, step=1, limit=18
  $region2: #{downsample_simple_forward.1} parent=0 // loop_pre_header
    _
  $region3: #{downsample_simple_forward.1} parent=0 // loop_header
    %s9 = sphi 0, %s13
    %p10 = scmp.ge.s32.totalorder %s9, 18
    %s16 = sphi 0, %s28
    %s17 = sphi 0, %s24
    %s18 = sphi 0, %s16
    %s19 = sphi 0, %s17
    %s20 = sphi 0, %s18
    %s21 = sphi 0, %s19
    %s33 = sphi 0, %s35
    %s36 = sphi 0, %s33
    %s37 = sphi 0, %s36
    %s53 = sphi 0, %s37
    %s63 = sphi 0, %s65
    %s66 = sphi 0, %s63
    %s67 = sphi 0, %s66
    %s83 = sphi 0, %s67
    %s87 = sphi 0, %s87
    %s89 = sphi 0, %s87
    %s90 = sphi 0, %s89
    %s104 = sphi 0, %s90
    %s112 = sphi 0, %s114
    %s115 = sphi 0, %s112
    %s116 = sphi 0, %s115
    %s132 = sphi 0, %s116
  $region4: #{downsample_simple_forward.1} parent=0 // loop_header_branch
    %12 = sbr.rel (%p10) target = $region8
  $region5: #{downsample_simple_forward.1} parent=0 // loop_body
    %s14 = ssub.s32 %s9, 1
    %s15 = ssub.s32 %s9, 2
    %s22 = sadd.s32 1, %s17
    %p23 = scmp.ge.s32.totalorder %s22, 8
    %s24 = scalar_select %p23, 0, %s22
    %s25 = sadd.s32 1, %s16
    %s26 = scalar_select %p23, %s25, %s16
    %p27 = scmp.ge.s32.totalorder %s26, 2
    %s28 = scalar_select %p27, 0, %s26
    %s29 = ssub.s32 %s16, %s28
    %s30 = ssub.s32 %s17, %s24
    %s31 = sor.u32 %s29, %s30
    %p32 = scmp.eq.s32.totalorder %s31, 0
    %s34 = sadd.s32 %s33, 1
    %s35 = scalar_select %p32, %s33, %s34
    %p38 = pneg %p32
    %p39 = scmp.eq.s32.totalorder %s9, 15
    %p40 = por %p38, %p39
    %p41 = scmp.ne.s32.totalorder %s33, %s36
    %p42 = scmp.eq.s32.totalorder %s9, 0
    %p43 = por %p41, %p42
    %p44 = scmp.ne.s32.totalorder %s33, %s36
    %p45 = scmp.eq.s32.totalorder %s14, 15
    %p46 = por %p44, %p45
    %p47 = scmp.ne.s32.totalorder %s36, %s37
    %p48 = scmp.eq.s32.totalorder %s14, 0
    %p49 = por %p47, %p48
    %p50 = scmp.ne.s32.totalorder %s36, %s37
    %p51 = scmp.eq.s32.totalorder %s15, 15
    %p52 = por %p50, %p51
    %p54 = scmp.ne.s32.totalorder %s37, %s53
    %p55 = scmp.eq.s32.totalorder %s15, 0
    %p56 = por %p54, %p55
    %s57 = sadd.s32 %s17, 1
    %s58 = sadd.s32 %s24, 1
    %s59 = ssub.s32 %s16, %s28
    %s60 = ssub.s32 %s57, %s58
    %s61 = sor.u32 %s59, %s60
    %p62 = scmp.eq.s32.totalorder %s61, 0
    %s64 = sadd.s32 %s63, 1
    %s65 = scalar_select %p62, %s63, %s64
    %p68 = pneg %p62
    %p69 = scmp.eq.s32.totalorder %s9, 15
    %p70 = por %p68, %p69
    %p71 = scmp.ne.s32.totalorder %s63, %s66
    %p72 = scmp.eq.s32.totalorder %s9, 0
    %p73 = por %p71, %p72
    %p74 = scmp.ne.s32.totalorder %s63, %s66
    %p75 = scmp.eq.s32.totalorder %s14, 15
    %p76 = por %p74, %p75
    %p77 = scmp.ne.s32.totalorder %s66, %s67
    %p78 = scmp.eq.s32.totalorder %s14, 0
    %p79 = por %p77, %p78
    %p80 = scmp.ne.s32.totalorder %s66, %s67
    %p81 = scmp.eq.s32.totalorder %s15, 15
    %p82 = por %p80, %p81
    %p84 = scmp.ne.s32.totalorder %s67, %s83
    %p85 = scmp.eq.s32.totalorder %s15, 0
    %p86 = por %p84, %p85
    %s88 = sadd.s32 %s87, 1
    %p91 = scmp.eq.s32.totalorder %s9, 15
    %p92 = scmp.ne.s32.totalorder %s87, %s89
    %p93 = scmp.eq.s32.totalorder %s9, 0
    %p94 = por %p92, %p93
    %p95 = scmp.ne.s32.totalorder %s87, %s89
    %p96 = scmp.eq.s32.totalorder %s14, 15
    %p97 = por %p95, %p96
    %p98 = scmp.ne.s32.totalorder %s89, %s90
    %p99 = scmp.eq.s32.totalorder %s14, 0
    %p100 = por %p98, %p99
    %p101 = scmp.ne.s32.totalorder %s89, %s90
    %p102 = scmp.eq.s32.totalorder %s15, 15
    %p103 = por %p101, %p102
    %p105 = scmp.ne.s32.totalorder %s90, %s104
    %p106 = scmp.eq.s32.totalorder %s15, 0
    %p107 = por %p105, %p106
    %s108 = ssub.s32 %s16, %s28
    %s109 = ssub.s32 %s17, %s24
    %s110 = sor.u32 %s108, %s109
    %p111 = scmp.eq.s32.totalorder %s110, 0
    %s113 = sadd.s32 %s112, 1
    %s114 = scalar_select %p111, %s112, %s113
    %p117 = pneg %p111
    %p118 = scmp.eq.s32.totalorder %s9, 15
    %p119 = por %p117, %p118
    %p120 = scmp.ne.s32.totalorder %s112, %s115
    %p121 = scmp.eq.s32.totalorder %s9, 0
    %p122 = por %p120, %p121
    %p123 = scmp.ne.s32.totalorder %s112, %s115
    %p124 = scmp.eq.s32.totalorder %s14, 15
    %p125 = por %p123, %p124
    %p126 = scmp.ne.s32.totalorder %s115, %s116
    %p127 = scmp.eq.s32.totalorder %s14, 0
    %p128 = por %p126, %p127
    %p129 = scmp.ne.s32.totalorder %s115, %s116
    %p130 = scmp.eq.s32.totalorder %s15, 15
    %p131 = por %p129, %p130
    %p133 = scmp.ne.s32.totalorder %s116, %s132
    %p134 = scmp.eq.s32.totalorder %s15, 0
    %p135 = por %p133, %p134
    %p136 = scmp.le.s32.totalorder 1, %s9
    %p137 = scmp.lt.s32.totalorder %s9, 17
    %p138 = pnand %p136, %p137
    %p139 = pneg %p138
    // Predicated region
    $region9: #{downsample_simple_forward.1} parent=5 // pred_check
      _
    $region10: #{downsample_simple_forward.1} parent=5 // pred_check_branch
      %141 = sbr.rel (%p138) target = $region12
    $region11: #{downsample_simple_forward.1} parent=5 // pred_region
      %s142 = ssub.s32 %s9, 1
      // Predicated region
      $region13: #{downsample_simple_forward.1} parent=11 // pred_check
        %p143 = pneg %p100
      $region14: #{downsample_simple_forward.1} parent=11 // pred_check_branch
        %145 = sbr.rel (%p143) target = $region16
      $region15: #{downsample_simple_forward.1} parent=11 // pred_region
        _
      $region16: #{downsample_simple_forward.1} parent=11 // pred_fallthru
        _
    $region12: #{downsample_simple_forward.1} parent=5 // pred_fallthru
      _
    %p146 = scmp.lt.s32.totalorder %s9, 16
    // Predicated region
    $region17: #{downsample_simple_forward.1} parent=5 // pred_check
      %p147 = pneg %p146
    $region18: #{downsample_simple_forward.1} parent=5 // pred_check_branch
      %149 = sbr.rel (%p147) target = $region20
    $region19: #{downsample_simple_forward.1} parent=5 // pred_region
      // Predicated region
      $region21: #{downsample_simple_forward.1} parent=19 // pred_check
        %p150 = pneg %p43
      $region22: #{downsample_simple_forward.1} parent=19 // pred_check_branch
        %152 = sbr.rel (%p150) target = $region24
      $region23: #{downsample_simple_forward.1} parent=19 // pred_region
        %p153 = scmp.lt.s32.totalorder %s16, 1
        %s154 = scalar_select %p153, %s16, 1
        %p155 = scmp.lt.s32.totalorder %s17, 8
        %s156 = scalar_select %p155, %s17, 8
        %s157 = smul.addr %s156, 8
        %s158 = smul.addr %s154, 72
        %s159 = sadd.s32 %s157, %s158
        %s160 = smul.addr %s159, 4
        %s161 = scalar_lea.vmem %s0, %s160
      $region24: #{downsample_simple_forward.1} parent=19 // pred_fallthru
        _
      // Predicated region
      $region25: #{downsample_simple_forward.1} parent=19 // pred_check
        %p162 = pneg %p73
      $region26: #{downsample_simple_forward.1} parent=19 // pred_check_branch
        %164 = sbr.rel (%p162) target = $region28
      $region27: #{downsample_simple_forward.1} parent=19 // pred_region
        %s165 = sadd.s32 %s17, 1
        %p166 = scmp.lt.s32.totalorder %s16, 1
        %s167 = scalar_select %p166, %s16, 1
        %p168 = scmp.lt.s32.totalorder %s165, 8
        %s169 = scalar_select %p168, %s165, 8
        %s170 = smul.addr %s169, 8
        %s171 = smul.addr %s167, 72
        %s172 = sadd.s32 %s170, %s171
        %s173 = smul.addr %s172, 4
        %s174 = scalar_lea.vmem %s1, %s173
        %s175 = sadd.s32 %s17, 1
      $region28: #{downsample_simple_forward.1} parent=19 // pred_fallthru
        _
    $region20: #{downsample_simple_forward.1} parent=5 // pred_fallthru
      _
    %p176 = scmp.le.s32.totalorder 1, %s9
    %p177 = scmp.lt.s32.totalorder %s9, 17
    %p178 = pnand %p176, %p177
    %p179 = pneg %p178
    // Predicated region
    $region29: #{downsample_simple_forward.1} parent=5 // pred_check
      _
    $region30: #{downsample_simple_forward.1} parent=5 // pred_check_branch
      %181 = sbr.rel (%p178) target = $region32
    $region31: #{downsample_simple_forward.1} parent=5 // pred_region
      %s182 = ssub.s32 %s9, 1
      %p183 = scmp.lt.s32.totalorder %s18, 1
      %s184 = scalar_select %p183, %s18, 1
      %p185 = scmp.lt.s32.totalorder %s19, 8
      %s186 = scalar_select %p185, %s19, 8
      %s187 = smul.addr %s186, 8
      %s188 = smul.addr %s184, 72
      %s189 = sadd.s32 %s187, %s188
      %s190 = smul.addr %s189, 4
      %s191 = scalar_lea.vmem %s0, %s190
      %p192 = pneg %p49
      %p193 = pneg %p46
      %s194 = sadd.s32 %s19, 1
      %p195 = scmp.lt.s32.totalorder %s18, 1
      %s196 = scalar_select %p195, %s18, 1
      %p197 = scmp.lt.s32.totalorder %s194, 8
      %s198 = scalar_select %p197, %s194, 8
      %s199 = smul.addr %s198, 8
      %s200 = smul.addr %s196, 72
      %s201 = sadd.s32 %s199, %s200
      %s202 = smul.addr %s201, 4
      %s203 = scalar_lea.vmem %s1, %s202
      %p204 = pneg %p79
      %p205 = pneg %p76
      %p206 = pneg %p100
      %p207 = pneg %p97
      %p208 = pneg %p128
      %p209 = pneg %p125
      %p210 = scmp.lt.s32.totalorder %s18, 1
      %s211 = scalar_select %p210, %s18, 1
      %p212 = scmp.lt.s32.totalorder %s19, 7
      %s213 = scalar_select %p212, %s19, 7
      %s214 = smul.addr %s211, 8
      %s215 = sadd.s32 %s213, %s214
      %s216 = smul.addr %s215, 8
      %s217 = scalar_lea.vmem %s3, %s216
      %p218 = scmp.lt.s32.totalorder %s18, 1
      %s219 = scalar_select %p218, %s18, 1
      %p220 = scmp.lt.s32.totalorder %s19, 8
      %s221 = scalar_select %p220, %s19, 8
      %s222 = smul.addr %s221, 8
      %s223 = smul.addr %s219, 72
      %s224 = sadd.s32 %s222, %s223
      %s225 = smul.addr %s224, 4
      %s226 = scalar_lea.vmem %s0, %s225
      %s227 = sadd.s32 %s19, 1
      %p228 = scmp.lt.s32.totalorder %s18, 1
      %s229 = scalar_select %p228, %s18, 1
      %p230 = scmp.lt.s32.totalorder %s227, 8
      %s231 = scalar_select %p230, %s227, 8
      %s232 = smul.addr %s231, 8
      %s233 = smul.addr %s229, 72
      %s234 = sadd.s32 %s232, %s233
      %s235 = smul.addr %s234, 4
      %s236 = scalar_lea.vmem %s1, %s235
      %s237 = sadd.s32 %s19, 1
      %p238 = scmp.lt.s32.totalorder %s18, 1
      %s239 = scalar_select %p238, %s18, 1
      %p240 = scmp.lt.s32.totalorder %s19, 7
      %s241 = scalar_select %p240, %s19, 7
      %s242 = smul.addr %s239, 8
      %s243 = sadd.s32 %s241, %s242
      %s244 = smul.addr %s243, 8
      %s245 = scalar_lea.vmem %s3, %s244
      %v247 = vld [vmem:[%s2] sm:$0xf]
      %v248 = vld [vmem:[%s226] sm:$0xf]
      %v249 = vld [vmem:[%s226 + $0x8] sm:$0xf]
      %v250 = vld [vmem:[%s226 + $0x10] sm:$0xf]
      %v251 = vld [vmem:[%s226 + $0x18] sm:$0xf]
      %s252 = scalar_lea.vmem %s2, 4
      %v253 = vld [vmem:[%s252] sm:$0xf]
      %v254 = vld [vmem:[%s226] sm:$0xff]
      %v255 = vld [vmem:[%s226 + $0x8] sm:$0xff]
      %v256 = vld [vmem:[%s226 + $0x10] sm:$0xff]
      %v257 = vld [vmem:[%s226 + $0x18] sm:$0xff]
      %v262 = vunpack.c.l.b16 %v254
      %v263 = vunpack.c.h.b16 %v254
      %v264 = vunpack.c.l.b16 %v255
      %v265 = vunpack.c.h.b16 %v255
      %v266 = vunpack.c.l.b16 %v256
      %v267 = vunpack.c.h.b16 %v256
      %v268 = vunpack.c.l.b16 %v257
      %v269 = vunpack.c.h.b16 %v257
      %v270 = vpack.c.b16 %v264, %v262
      %v271 = vpack.c.b16 %v265, %v263
      %v272 = vpack.c.b16 %v268, %v266
      %v273 = vpack.c.b16 %v269, %v267
      %274 = vrot.lane.b32.xlu0 %v270, 127
      %v275 = vpop.permute.xlu0 %274
      %276 = vrot.lane.b32.xlu0 %v271, 127
      %v277 = vpop.permute.xlu0 %276
      %278 = vrot.lane.b32.xlu0 %v272, 127
      %v279 = vpop.permute.xlu0 %278
      %280 = vrot.lane.b32.xlu0 %v273, 127
      %v281 = vpop.permute.xlu0 %280
      %vm282 = vcmask 1039360
      %v283 = vsel %vm282, %v275, %v277
      %v284 = vsel %vm282, %v279, %v281
      %vm287 = vcmask 261120
      %v289 = vsel %vm287, %v253, 0
      %291 = vmatprep.subr.bf16.mxu0 0
      %292 = vmatpush1.bf16.msra.mxu0 %v283
      %293 = vmatprep.subr.bf16.mxu0 0
      %294 = vmatpush1.bf16.msra.mxu0 %v284
      %295 = vmatprep.subr.bf16.mxu0 0
      %296 = vmatpush1.bf16.msra.mxu0 0
      %297 = vmatprep.subr.bf16.mxu0 0
      %298 = vmatpush1.bf16.msra.mxu0 0
      %299 = vmatprep.subr.bf16.mxu0 0
      %300 = vmatpush1.bf16.msra.mxu0 0
      %301 = vmatprep.subr.bf16.mxu0 0
      %302 = vmatpush1.bf16.msra.mxu0 0
      %303 = vmatprep.subr.bf16.mxu0 0
      %304 = vmatpush1.bf16.msra.mxu0 0
      %305 = vmatprep.subr.bf16.mxu0 0
      %306 = vmatpush1.bf16.msra.mxu0 0
      %307 = vmatprep.subr.bf16.mxu0 0
      %308 = vmatpush1.bf16.msra.mxu0 0
      %309 = vmatprep.subr.bf16.mxu0 0
      %310 = vmatpush1.bf16.msra.mxu0 0
      %311 = vmatprep.subr.bf16.mxu0 0
      %312 = vmatpush1.bf16.msra.mxu0 0
      %313 = vmatprep.subr.bf16.mxu0 0
      %314 = vmatpush1.bf16.msra.mxu0 0
      %315 = vmatprep.subr.bf16.mxu0 0
      %316 = vmatpush1.bf16.msra.mxu0 0
      %317 = vmatprep.subr.bf16.mxu0 0
      %318 = vmatpush1.bf16.msra.mxu0 0
      %319 = vmatprep.subr.bf16.mxu0 0
      %320 = vmatpush1.bf16.msra.mxu0 0
      %321 = vmatprep.subr.bf16.mxu0 0
      %322 = vmatpush1.bf16.msra.mxu0 0
      %323 = vmatprep.mubr.bf16.mxu0 0
      %324 = vmatmul.mubr.bf16.gmra.mrb[0].mxu0 %v289
      %v325 = vpop.f32.mrb[0].mxu0
      %v326 = vadd.f32 0.0, %v325
      %v327 = vpop.f32.mrb[0].mxu0
      %v328 = vpop.f32.mrb[0].mxu0
      %v329 = vpop.f32.mrb[0].mxu0
      %330 = vdwg.mxu0
      %v335 = vunpack.c.l.b16 %v248
      %v336 = vunpack.c.l.b16 %v249
      %v337 = vunpack.c.l.b16 %v250
      %v338 = vunpack.c.l.b16 %v251
      %v339 = vpack.c.b16 %v336, %v335
      %v340 = vpack.c.b16 %v338, %v337
      %v344 = vsel %vm287, %v247, 0
      %346 = vmatprep.subr.bf16.mxu0 0
      %347 = vmatpush1.bf16.msra.mxu0 %v339
      %348 = vmatprep.subr.bf16.mxu0 0
      %349 = vmatpush1.bf16.msra.mxu0 %v340
      %350 = vmatprep.subr.bf16.mxu0 0
      %351 = vmatpush1.bf16.msra.mxu0 0
      %352 = vmatprep.subr.bf16.mxu0 0
      %353 = vmatpush1.bf16.msra.mxu0 0
      %354 = vmatprep.subr.bf16.mxu0 0
      %355 = vmatpush1.bf16.msra.mxu0 0
      %356 = vmatprep.subr.bf16.mxu0 0
      %357 = vmatpush1.bf16.msra.mxu0 0
      %358 = vmatprep.subr.bf16.mxu0 0
      %359 = vmatpush1.bf16.msra.mxu0 0
      %360 = vmatprep.subr.bf16.mxu0 0
      %361 = vmatpush1.bf16.msra.mxu0 0
      %362 = vmatprep.subr.bf16.mxu0 0
      %363 = vmatpush1.bf16.msra.mxu0 0
      %364 = vmatprep.subr.bf16.mxu0 0
      %365 = vmatpush1.bf16.msra.mxu0 0
      %366 = vmatprep.subr.bf16.mxu0 0
      %367 = vmatpush1.bf16.msra.mxu0 0
      %368 = vmatprep.subr.bf16.mxu0 0
      %369 = vmatpush1.bf16.msra.mxu0 0
      %370 = vmatprep.subr.bf16.mxu0 0
      %371 = vmatpush1.bf16.msra.mxu0 0
      %372 = vmatprep.subr.bf16.mxu0 0
      %373 = vmatpush1.bf16.msra.mxu0 0
      %374 = vmatprep.subr.bf16.mxu0 0
      %375 = vmatpush1.bf16.msra.mxu0 0
      %376 = vmatprep.subr.bf16.mxu0 0
      %377 = vmatpush1.bf16.msra.mxu0 0
      %378 = vmatprep.mubr.bf16.mxu0 0
      %379 = vmatmul.mubr.bf16.gmra.mrb[0].mxu0 %v344
      %v380 = vpop.f32.mrb[0].mxu0
      %v381 = vadd.f32 %v326, %v380
      %v382 = vpop.f32.mrb[0].mxu0
      %v383 = vpop.f32.mrb[0].mxu0
      %v384 = vpop.f32.mrb[0].mxu0
      %385 = vdwg.mxu0
      %s386 = scalar_lea.vmem %s2, 8
      %v387 = vld [vmem:[%s386] sm:$0xf]
      %388 = vrot.lane.b32.xlu0 %v270, 119
      %v389 = vpop.permute.xlu0 %388
      %390 = vrot.lane.b32.xlu0 %v271, 119
      %v391 = vpop.permute.xlu0 %390
      %392 = vrot.lane.b32.xlu0 %v272, 119
      %v393 = vpop.permute.xlu0 %392
      %394 = vrot.lane.b32.xlu0 %v273, 119
      %v395 = vpop.permute.xlu0 %394
      %vm396 = vcmask 973824
      %v397 = vsel %vm396, %v389, %v391
      %v398 = vsel %vm396, %v393, %v395
      %v402 = vsel %vm287, %v387, 0
      %404 = vmatprep.subr.bf16.mxu0 0
      %405 = vmatpush1.bf16.msra.mxu0 %v397
      %406 = vmatprep.subr.bf16.mxu0 0
      %407 = vmatpush1.bf16.msra.mxu0 %v398
      %408 = vmatprep.subr.bf16.mxu0 0
      %409 = vmatpush1.bf16.msra.mxu0 0
      %410 = vmatprep.subr.bf16.mxu0 0
      %411 = vmatpush1.bf16.msra.mxu0 0
      %412 = vmatprep.subr.bf16.mxu0 0
      %413 = vmatpush1.bf16.msra.mxu0 0
      %414 = vmatprep.subr.bf16.mxu0 0
      %415 = vmatpush1.bf16.msra.mxu0 0
      %416 = vmatprep.subr.bf16.mxu0 0
      %417 = vmatpush1.bf16.msra.mxu0 0
      %418 = vmatprep.subr.bf16.mxu0 0
      %419 = vmatpush1.bf16.msra.mxu0 0
      %420 = vmatprep.subr.bf16.mxu0 0
      %421 = vmatpush1.bf16.msra.mxu0 0
      %422 = vmatprep.subr.bf16.mxu0 0
      %423 = vmatpush1.bf16.msra.mxu0 0
      %424 = vmatprep.subr.bf16.mxu0 0
      %425 = vmatpush1.bf16.msra.mxu0 0
      %426 = vmatprep.subr.bf16.mxu0 0
      %427 = vmatpush1.bf16.msra.mxu0 0
      %428 = vmatprep.subr.bf16.mxu0 0
      %429 = vmatpush1.bf16.msra.mxu0 0
      %430 = vmatprep.subr.bf16.mxu0 0
      %431 = vmatpush1.bf16.msra.mxu0 0
      %432 = vmatprep.subr.bf16.mxu0 0
      %433 = vmatpush1.bf16.msra.mxu0 0
      %434 = vmatprep.subr.bf16.mxu0 0
      %435 = vmatpush1.bf16.msra.mxu0 0
      %436 = vmatprep.mubr.bf16.mxu0 0
      %437 = vmatmul.mubr.bf16.gmra.mrb[0].mxu0 %v402
      %v438 = vpop.f32.mrb[0].mxu0
      %v439 = vadd.f32 0.0, %v438
      %v440 = vpop.f32.mrb[0].mxu0
      %v441 = vpop.f32.mrb[0].mxu0
      %v442 = vpop.f32.mrb[0].mxu0
      %443 = vdwg.mxu0
      %v444 = vadd.f32 %v381, %v439
      %s445 = scalar_lea.vmem %s2, 12
      %v446 = vld [vmem:[%s445] sm:$0xf]
      %447 = vrot.lane.b32.xlu0 %v270, 118
      %v448 = vpop.permute.xlu0 %447
      %449 = vrot.lane.b32.xlu0 %v271, 118
      %v450 = vpop.permute.xlu0 %449
      %451 = vrot.lane.b32.xlu0 %v272, 118
      %v452 = vpop.permute.xlu0 %451
      %453 = vrot.lane.b32.xlu0 %v273, 118
      %v454 = vpop.permute.xlu0 %453
      %vm455 = vcmask 965632
      %v456 = vsel %vm455, %v448, %v450
      %v457 = vsel %vm455, %v452, %v454
      %v461 = vsel %vm287, %v446, 0
      %463 = vmatprep.subr.bf16.mxu0 0
      %464 = vmatpush1.bf16.msra.mxu0 %v456
      %465 = vmatprep.subr.bf16.mxu0 0
      %466 = vmatpush1.bf16.msra.mxu0 %v457
      %467 = vmatprep.subr.bf16.mxu0 0
      %468 = vmatpush1.bf16.msra.mxu0 0
      %469 = vmatprep.subr.bf16.mxu0 0
      %470 = vmatpush1.bf16.msra.mxu0 0
      %471 = vmatprep.subr.bf16.mxu0 0
      %472 = vmatpush1.bf16.msra.mxu0 0
      %473 = vmatprep.subr.bf16.mxu0 0
      %474 = vmatpush1.bf16.msra.mxu0 0
      %475 = vmatprep.subr.bf16.mxu0 0
      %476 = vmatpush1.bf16.msra.mxu0 0
      %477 = vmatprep.subr.bf16.mxu0 0
      %478 = vmatpush1.bf16.msra.mxu0 0
      %479 = vmatprep.subr.bf16.mxu0 0
      %480 = vmatpush1.bf16.msra.mxu0 0
      %481 = vmatprep.subr.bf16.mxu0 0
      %482 = vmatpush1.bf16.msra.mxu0 0
      %483 = vmatprep.subr.bf16.mxu0 0
      %484 = vmatpush1.bf16.msra.mxu0 0
      %485 = vmatprep.subr.bf16.mxu0 0
      %486 = vmatpush1.bf16.msra.mxu0 0
      %487 = vmatprep.subr.bf16.mxu0 0
      %488 = vmatpush1.bf16.msra.mxu0 0
      %489 = vmatprep.subr.bf16.mxu0 0
      %490 = vmatpush1.bf16.msra.mxu0 0
      %491 = vmatprep.subr.bf16.mxu0 0
      %492 = vmatpush1.bf16.msra.mxu0 0
      %493 = vmatprep.subr.bf16.mxu0 0
      %494 = vmatpush1.bf16.msra.mxu0 0
      %495 = vmatprep.mubr.bf16.mxu0 0
      %496 = vmatmul.mubr.bf16.gmra.mrb[0].mxu0 %v461
      %v497 = vpop.f32.mrb[0].mxu0
      %v498 = vadd.f32 0.0, %v497
      %v499 = vpop.f32.mrb[0].mxu0
      %v500 = vpop.f32.mrb[0].mxu0
      %v501 = vpop.f32.mrb[0].mxu0
      %502 = vdwg.mxu0
      %v503 = vadd.f32 %v444, %v498
      %s504 = scalar_lea.vmem %s2, 16
      %v505 = vld [vmem:[%s504] sm:$0xf]
      %v506 = vld [vmem:[%s236] sm:$0xf]
      %v507 = vld [vmem:[%s236 + $0x8] sm:$0xf]
      %v508 = vld [vmem:[%s236 + $0x10] sm:$0xf]
      %v509 = vld [vmem:[%s236 + $0x18] sm:$0xf]
      %v514 = vunpack.c.l.b16 %v506
      %v515 = vunpack.c.l.b16 %v507
      %v516 = vunpack.c.l.b16 %v508
      %v517 = vunpack.c.l.b16 %v509
      %v518 = vpack.c.b16 %v515, %v514
      %v519 = vpack.c.b16 %v517, %v516
      %v523 = vsel %vm287, %v505, 0
      %525 = vmatprep.subr.bf16.mxu0 0
      %526 = vmatpush1.bf16.msra.mxu0 %v518
      %527 = vmatprep.subr.bf16.mxu0 0
      %528 = vmatpush1.bf16.msra.mxu0 %v519
      %529 = vmatprep.subr.bf16.mxu0 0
      %530 = vmatpush1.bf16.msra.mxu0 0
      %531 = vmatprep.subr.bf16.mxu0 0
      %532 = vmatpush1.bf16.msra.mxu0 0
      %533 = vmatprep.subr.bf16.mxu0 0
      %534 = vmatpush1.bf16.msra.mxu0 0
      %535 = vmatprep.subr.bf16.mxu0 0
      %536 = vmatpush1.bf16.msra.mxu0 0
      %537 = vmatprep.subr.bf16.mxu0 0
      %538 = vmatpush1.bf16.msra.mxu0 0
      %539 = vmatprep.subr.bf16.mxu0 0
      %540 = vmatpush1.bf16.msra.mxu0 0
      %541 = vmatprep.subr.bf16.mxu0 0
      %542 = vmatpush1.bf16.msra.mxu0 0
      %543 = vmatprep.subr.bf16.mxu0 0
      %544 = vmatpush1.bf16.msra.mxu0 0
      %545 = vmatprep.subr.bf16.mxu0 0
      %546 = vmatpush1.bf16.msra.mxu0 0
      %547 = vmatprep.subr.bf16.mxu0 0
      %548 = vmatpush1.bf16.msra.mxu0 0
      %549 = vmatprep.subr.bf16.mxu0 0
      %550 = vmatpush1.bf16.msra.mxu0 0
      %551 = vmatprep.subr.bf16.mxu0 0
      %552 = vmatpush1.bf16.msra.mxu0 0
      %553 = vmatprep.subr.bf16.mxu0 0
      %554 = vmatpush1.bf16.msra.mxu0 0
      %555 = vmatprep.subr.bf16.mxu0 0
      %556 = vmatpush1.bf16.msra.mxu0 0
      %557 = vmatprep.mubr.bf16.mxu0 0
      %558 = vmatmul.mubr.bf16.gmra.mrb[0].mxu0 %v523
      %v559 = vpop.f32.mrb[0].mxu0
      %v560 = vadd.f32 0.0, %v559
      %v561 = vpop.f32.mrb[0].mxu0
      %v562 = vpop.f32.mrb[0].mxu0
      %v563 = vpop.f32.mrb[0].mxu0
      %564 = vdwg.mxu0
      %v565 = vadd.f32 %v503, %v560
      %s566 = scalar_lea.vmem %s2, 20
      %v567 = vld [vmem:[%s566] sm:$0xf]
      %v568 = vld [vmem:[%s236] sm:$0xff]
      %v569 = vld [vmem:[%s236 + $0x8] sm:$0xff]
      %v570 = vld [vmem:[%s236 + $0x10] sm:$0xff]
      %v571 = vld [vmem:[%s236 + $0x18] sm:$0xff]
      %v576 = vunpack.c.l.b16 %v568
      %v577 = vunpack.c.h.b16 %v568
      %v578 = vunpack.c.l.b16 %v569
      %v579 = vunpack.c.h.b16 %v569
      %v580 = vunpack.c.l.b16 %v570
      %v581 = vunpack.c.h.b16 %v570
      %v582 = vunpack.c.l.b16 %v571
      %v583 = vunpack.c.h.b16 %v571
      %v584 = vpack.c.b16 %v578, %v576
      %v585 = vpack.c.b16 %v579, %v577
      %v586 = vpack.c.b16 %v582, %v580
      %v587 = vpack.c.b16 %v583, %v581
      %588 = vrot.lane.b32.xlu0 %v584, 127
      %v589 = vpop.permute.xlu0 %588
      %590 = vrot.lane.b32.xlu0 %v585, 127
      %v591 = vpop.permute.xlu0 %590
      %592 = vrot.lane.b32.xlu0 %v586, 127
      %v593 = vpop.permute.xlu0 %592
      %594 = vrot.lane.b32.xlu0 %v587, 127
      %v595 = vpop.permute.xlu0 %594
      %v596 = vsel %vm282, %v589, %v591
      %v597 = vsel %vm282, %v593, %v595
      %v601 = vsel %vm287, %v567, 0
      %603 = vmatprep.subr.bf16.mxu0 0
      %604 = vmatpush1.bf16.msra.mxu0 %v596
      %605 = vmatprep.subr.bf16.mxu0 0
      %606 = vmatpush1.bf16.msra.mxu0 %v597
      %607 = vmatprep.subr.bf16.mxu0 0
      %608 = vmatpush1.bf16.msra.mxu0 0
      %609 = vmatprep.subr.bf16.mxu0 0
      %610 = vmatpush1.bf16.msra.mxu0 0
      %611 = vmatprep.subr.bf16.mxu0 0
      %612 = vmatpush1.bf16.msra.mxu0 0
      %613 = vmatprep.subr.bf16.mxu0 0
      %614 = vmatpush1.bf16.msra.mxu0 0
      %615 = vmatprep.subr.bf16.mxu0 0
      %616 = vmatpush1.bf16.msra.mxu0 0
      %617 = vmatprep.subr.bf16.mxu0 0
      %618 = vmatpush1.bf16.msra.mxu0 0
      %619 = vmatprep.subr.bf16.mxu0 0
      %620 = vmatpush1.bf16.msra.mxu0 0
      %621 = vmatprep.subr.bf16.mxu0 0
      %622 = vmatpush1.bf16.msra.mxu0 0
      %623 = vmatprep.subr.bf16.mxu0 0
      %624 = vmatpush1.bf16.msra.mxu0 0
      %625 = vmatprep.subr.bf16.mxu0 0
      %626 = vmatpush1.bf16.msra.mxu0 0
      %627 = vmatprep.subr.bf16.mxu0 0
      %628 = vmatpush1.bf16.msra.mxu0 0
      %629 = vmatprep.subr.bf16.mxu0 0
      %630 = vmatpush1.bf16.msra.mxu0 0
      %631 = vmatprep.subr.bf16.mxu0 0
      %632 = vmatpush1.bf16.msra.mxu0 0
      %633 = vmatprep.subr.bf16.mxu0 0
      %634 = vmatpush1.bf16.msra.mxu0 0
      %635 = vmatprep.mubr.bf16.mxu0 0
      %636 = vmatmul.mubr.bf16.gmra.mrb[0].mxu0 %v601
      %v637 = vpop.f32.mrb[0].mxu0
      %v638 = vadd.f32 0.0, %v637
      %v639 = vpop.f32.mrb[0].mxu0
      %v640 = vpop.f32.mrb[0].mxu0
      %v641 = vpop.f32.mrb[0].mxu0
      %642 = vdwg.mxu0
      %v643 = vadd.f32 %v565, %v638
      %s644 = scalar_lea.vmem %s2, 24
      %v645 = vld [vmem:[%s644] sm:$0xf]
      %646 = vrot.lane.b32.xlu0 %v584, 119
      %v647 = vpop.permute.xlu0 %646
      %648 = vrot.lane.b32.xlu0 %v585, 119
      %v649 = vpop.permute.xlu0 %648
      %650 = vrot.lane.b32.xlu0 %v586, 119
      %v651 = vpop.permute.xlu0 %650
      %652 = vrot.lane.b32.xlu0 %v587, 119
      %v653 = vpop.permute.xlu0 %652
      %v654 = vsel %vm396, %v647, %v649
      %v655 = vsel %vm396, %v651, %v653
      %v659 = vsel %vm287, %v645, 0
      %661 = vmatprep.subr.bf16.mxu0 0
      %662 = vmatpush1.bf16.msra.mxu0 %v654
      %663 = vmatprep.subr.bf16.mxu0 0
      %664 = vmatpush1.bf16.msra.mxu0 %v655
      %665 = vmatprep.subr.bf16.mxu0 0
      %666 = vmatpush1.bf16.msra.mxu0 0
      %667 = vmatprep.subr.bf16.mxu0 0
      %668 = vmatpush1.bf16.msra.mxu0 0
      %669 = vmatprep.subr.bf16.mxu0 0
      %670 = vmatpush1.bf16.msra.mxu0 0
      %671 = vmatprep.subr.bf16.mxu0 0
      %672 = vmatpush1.bf16.msra.mxu0 0
      %673 = vmatprep.subr.bf16.mxu0 0
      %674 = vmatpush1.bf16.msra.mxu0 0
      %675 = vmatprep.subr.bf16.mxu0 0
      %676 = vmatpush1.bf16.msra.mxu0 0
      %677 = vmatprep.subr.bf16.mxu0 0
      %678 = vmatpush1.bf16.msra.mxu0 0
      %679 = vmatprep.subr.bf16.mxu0 0
      %680 = vmatpush1.bf16.msra.mxu0 0
      %681 = vmatprep.subr.bf16.mxu0 0
      %682 = vmatpush1.bf16.msra.mxu0 0
      %683 = vmatprep.subr.bf16.mxu0 0
      %684 = vmatpush1.bf16.msra.mxu0 0
      %685 = vmatprep.subr.bf16.mxu0 0
      %686 = vmatpush1.bf16.msra.mxu0 0
      %687 = vmatprep.subr.bf16.mxu0 0
      %688 = vmatpush1.bf16.msra.mxu0 0
      %689 = vmatprep.subr.bf16.mxu0 0
      %690 = vmatpush1.bf16.msra.mxu0 0
      %691 = vmatprep.subr.bf16.mxu0 0
      %692 = vmatpush1.bf16.msra.mxu0 0
      %693 = vmatprep.mubr.bf16.mxu0 0
      %694 = vmatmul.mubr.bf16.gmra.mrb[0].mxu0 %v659
      %v695 = vpop.f32.mrb[0].mxu0
      %v696 = vadd.f32 0.0, %v695
      %v697 = vpop.f32.mrb[0].mxu0
      %v698 = vpop.f32.mrb[0].mxu0
      %v699 = vpop.f32.mrb[0].mxu0
      %700 = vdwg.mxu0
      %v701 = vadd.f32 %v643, %v696
      %s702 = scalar_lea.vmem %s2, 28
      %v703 = vld [vmem:[%s702] sm:$0xf]
      %704 = vrot.lane.b32.xlu0 %v584, 118
      %v705 = vpop.permute.xlu0 %704
      %706 = vrot.lane.b32.xlu0 %v585, 118
      %v707 = vpop.permute.xlu0 %706
      %708 = vrot.lane.b32.xlu0 %v586, 118
      %v709 = vpop.permute.xlu0 %708
      %710 = vrot.lane.b32.xlu0 %v587, 118
      %v711 = vpop.permute.xlu0 %710
      %v712 = vsel %vm455, %v705, %v707
      %v713 = vsel %vm455, %v709, %v711
      %v717 = vsel %vm287, %v703, 0
      %719 = vmatprep.subr.bf16.mxu0 0
      %720 = vmatpush1.bf16.msra.mxu0 %v712
      %721 = vmatprep.subr.bf16.mxu0 0
      %722 = vmatpush1.bf16.msra.mxu0 %v713
      %723 = vmatprep.subr.bf16.mxu0 0
      %724 = vmatpush1.bf16.msra.mxu0 0
      %725 = vmatprep.subr.bf16.mxu0 0
      %726 = vmatpush1.bf16.msra.mxu0 0
      %727 = vmatprep.subr.bf16.mxu0 0
      %728 = vmatpush1.bf16.msra.mxu0 0
      %729 = vmatprep.subr.bf16.mxu0 0
      %730 = vmatpush1.bf16.msra.mxu0 0
      %731 = vmatprep.subr.bf16.mxu0 0
      %732 = vmatpush1.bf16.msra.mxu0 0
      %733 = vmatprep.subr.bf16.mxu0 0
      %734 = vmatpush1.bf16.msra.mxu0 0
      %735 = vmatprep.subr.bf16.mxu0 0
      %736 = vmatpush1.bf16.msra.mxu0 0
      %737 = vmatprep.subr.bf16.mxu0 0
      %738 = vmatpush1.bf16.msra.mxu0 0
      %739 = vmatprep.subr.bf16.mxu0 0
      %740 = vmatpush1.bf16.msra.mxu0 0
      %741 = vmatprep.subr.bf16.mxu0 0
      %742 = vmatpush1.bf16.msra.mxu0 0
      %743 = vmatprep.subr.bf16.mxu0 0
      %744 = vmatpush1.bf16.msra.mxu0 0
      %745 = vmatprep.subr.bf16.mxu0 0
      %746 = vmatpush1.bf16.msra.mxu0 0
      %747 = vmatprep.subr.bf16.mxu0 0
      %748 = vmatpush1.bf16.msra.mxu0 0
      %749 = vmatprep.subr.bf16.mxu0 0
      %750 = vmatpush1.bf16.msra.mxu0 0
      %751 = vmatprep.mubr.bf16.mxu0 0
      %752 = vmatmul.mubr.bf16.gmra.mrb[0].mxu0 %v717
      %v753 = vpop.f32.mrb[0].mxu0
      %v754 = vadd.f32 0.0, %v753
      %v755 = vpop.f32.mrb[0].mxu0
      %v756 = vpop.f32.mrb[0].mxu0
      %v757 = vpop.f32.mrb[0].mxu0
      %758 = vdwg.mxu0
      %v759 = vadd.f32 %v701, %v754
      %760 = vst [vmem:[%s245] sm:$0xff] %v759
      %p761 = scmp.lt.s32.totalorder %s18, 1
      %s762 = scalar_select %p761, %s18, 1
      %p763 = scmp.lt.s32.totalorder %s19, 7
      %s764 = scalar_select %p763, %s19, 7
      %s765 = smul.addr %s762, 8
      %s766 = sadd.s32 %s764, %s765
      %s767 = smul.addr %s766, 8
      %s768 = scalar_lea.vmem %s3, %s767
      // Predicated region
      $region33: #{downsample_simple_forward.1} parent=31 // pred_check
        %p769 = pneg %p125
      $region34: #{downsample_simple_forward.1} parent=31 // pred_check_branch
        %771 = sbr.rel (%p769) target = $region36
      $region35: #{downsample_simple_forward.1} parent=31 // pred_region
        _
      $region36: #{downsample_simple_forward.1} parent=31 // pred_fallthru
        _
    $region32: #{downsample_simple_forward.1} parent=5 // pred_fallthru
      _
    %p772 = scmp.le.s32.totalorder 2, %s9
    // Predicated region
    $region37: #{downsample_simple_forward.1} parent=5 // pred_check
      %p773 = pneg %p772
    $region38: #{downsample_simple_forward.1} parent=5 // pred_check_branch
      %775 = sbr.rel (%p773) target = $region40
    $region39: #{downsample_simple_forward.1} parent=5 // pred_region
      %s776 = ssub.s32 %s9, 2
      // Predicated region
      $region41: #{downsample_simple_forward.1} parent=39 // pred_check
        %p777 = pneg %p131
      $region42: #{downsample_simple_forward.1} parent=39 // pred_check_branch
        %779 = sbr.rel (%p777) target = $region44
      $region43: #{downsample_simple_forward.1} parent=39 // pred_region
        %p780 = scmp.lt.s32.totalorder %s20, 1
        %s781 = scalar_select %p780, %s20, 1
        %p782 = scmp.lt.s32.totalorder %s21, 7
        %s783 = scalar_select %p782, %s21, 7
        %s784 = smul.addr %s781, 8
        %s785 = sadd.s32 %s783, %s784
        %s786 = smul.addr %s785, 8
        %s787 = scalar_lea.vmem %s3, %s786
      $region44: #{downsample_simple_forward.1} parent=39 // pred_fallthru
        _
    $region40: #{downsample_simple_forward.1} parent=5 // pred_fallthru
      _
  $region6: #{downsample_simple_forward.1} parent=0 // loop_footer
    %s13 = sadd.s32 1, %s9
  $region7: #{downsample_simple_forward.1} parent=0 // loop_footer_branch
    %8 = sbr.rel target = $region3
  $region8: #{downsample_simple_forward.1} parent=0 // loop_exit
    _

</llo_original>
